<compile_context>
chip_gen: v7x
topology: tpu7x:2x2x1
jax: 0.10.0
libtpu: 0.0.40
codegen_flags: <defaults>
</compile_context>

<pallas_src>
import functools

import jax
import jax.numpy as jnp
from jax.experimental import pallas as pl
from jax.experimental.pallas import tpu as pltpu

_MASK_VALUE = -1e30


def _weighted_pool_kernel(x_ref, mask_ref, w_ref, out_ref):
    # x_ref:    (TB, S, D)   input features for this batch group (native dtype)
    # mask_ref: (TB, S)      f32, 1.0 = valid position, 0.0 = padded position
    # w_ref:    (1, D)       f32 learned projection (lane-major row)
    # out_ref:  (TB, D)      pooled output for this batch group
    x = x_ref[...].astype(jnp.float32)        # (TB, S, D)
    m = mask_ref[...]                         # (TB, S) f32
    w = w_ref[...]                            # (1, D)  f32

    # logits[b, s] = sum_d x[b, s, d] * w[d]   (lane-axis reduce -> XLU)
    logits = jnp.sum(x * w[:, None, :], axis=-1)           # (TB, S)
    # mask_logits: push padded positions to -1e30
    logits = logits + (1.0 - m) * _MASK_VALUE               # (TB, S)

    # Numerically stable softmax over the sequence axis, normalization deferred.
    lmax = jnp.max(logits, axis=1, keepdims=True)           # (TB, 1)
    p = jnp.exp(logits - lmax)                               # (TB, S)  EUP
    denom = jnp.sum(p, axis=1, keepdims=True)                # (TB, 1)

    # pooled[b, :] = (sum_s p[b, s] * x[b, s, :]) / denom[b]
    pooled = jnp.sum(p[:, :, None] * x, axis=1)              # (TB, D) f32
    pooled = pooled / denom                                   # normalize once
    out_ref[...] = pooled.astype(out_ref.dtype)


def _pick_batch_tile(bsz, seq, dim, itemsize):
    """Batch-group size: whole batch if small, else a multiple of 8 sized so the
    x tile stays ~<= 4 MiB (leaves room for double-buffering + the in-kernel
    f32 temporaries in scoped VMEM; 4 MiB tiles already sit at ~86% of the HBM
    roofline for a streaming kernel)."""
    if bsz <= 8:
        return bsz
    row_bytes = max(seq * dim * itemsize, 1)
    target = 4 * 1024 * 1024
    tb = (target // row_bytes) // 8 * 8
    tb = max(8, tb)
    return min(bsz, tb)


@jax.jit
def weighted_pool(x, mask, weight):
    """x: (B, S, D) float, mask: (B, S) {0,1}, weight: (D, 1). Returns (B, D)."""
    bsz, seq, dim = x.shape
    assert weight.shape == (dim, 1)
    assert mask.shape == (bsz, seq)

    w_row = weight.reshape(1, dim).astype(jnp.float32)   # (D, 1) -> (1, D), lane-major
    mask_f = mask.astype(jnp.float32)

    tb = _pick_batch_tile(bsz, seq, dim, x.dtype.itemsize)
    grid = (pl.cdiv(bsz, tb),)

    return pl.pallas_call(
        _weighted_pool_kernel,
        out_shape=jax.ShapeDtypeStruct((bsz, dim), x.dtype),
        grid=grid,
        in_specs=[
            # Batch group of x; trailing (S, D) are full dims -> legal tiling.
            pl.BlockSpec((tb, seq, dim), lambda b: (b, 0, 0)),
            pl.BlockSpec((tb, seq), lambda b: (b, 0)),
            # Weight row: constant block across the whole grid (loaded once).
            pl.BlockSpec((1, dim), lambda b: (0, 0)),
        ],
        out_specs=pl.BlockSpec((tb, dim), lambda b: (b, 0)),
        compiler_params=pltpu.CompilerParams(
            dimension_semantics=("parallel",)
        ),
    )(x, mask_f, w_row)


def weighted_pool_ref(x, mask, weight):
    """Pure-JAX reference matching the PyTorch module."""
    alpha = jnp.einsum("bsd,dk->bsk", x, weight)                    # (B, S, 1)
    alpha = alpha + (1.0 - mask[:, :, None].astype(x.dtype)) * _MASK_VALUE
    alphas = jax.nn.softmax(alpha, axis=1)                          # (B, S, 1)
    pooled = jnp.einsum("bsd,bsk->bdk", x, alphas)                  # (B, D, 1)
    return pooled[..., 0]                                           # (B, D)


if __name__ == "__main__":
    # Small, deterministic shapes consistent with the module: (B, S, D).
    bsz, seq, dim = 2, 8, 32

    key = jax.random.PRNGKey(0)
    k_x, k_w = jax.random.split(key)

    x = jax.random.normal(k_x, (bsz, seq, dim), jnp.float32)

    # Xavier-uniform init for weight of shape (dim, 1), as in the module.
    bound = (6.0 / (dim + 1)) ** 0.5
    weight = jax.random.uniform(k_w, (dim, 1), jnp.float32, -bound, bound)

    # Valid-length mask: batch 0 has 6 valid positions, batch 1 has 8.
    lengths = jnp.array([6, 8], dtype=jnp.int32)
    mask = (jnp.arange(seq)[None, :] < lengths[:, None]).astype(jnp.float32)

    out = weighted_pool(x, mask, weight)
    out = jax.block_until_ready(out)

    ref = weighted_pool_ref(x, mask, weight)

    assert out.shape == (bsz, dim)
    assert jnp.allclose(out, ref, rtol=1e-5, atol=1e-5), (
        f"max abs err = {jnp.max(jnp.abs(out - ref))}"
    )

    print("KERNEL_OK")
</pallas_src>

<mosaic_0001>
module attributes {stable_mosaic.version = 11 : i64} {
  func.func @_weighted_pool_kernel(%arg0: i32, %arg1: memref<2x8x32xf32, #tpu.memory_space<vmem>>, %arg2: memref<2x8xf32, #tpu.memory_space<vmem>>, %arg3: memref<1x32xf32, #tpu.memory_space<vmem>>, %arg4: memref<2x32xf32, #tpu.memory_space<vmem>>) attributes {dimension_semantics = [#tpu.dimension_semantics<parallel>], iteration_bounds = array<i64: 1>, scalar_prefetch = 0 : i64, scratch_operands = 0 : i64, tpu.core_type = #tpu.core_type<tc>, window_params = [{transform_indices = @transform_0, window_bounds = array<i64: 2, 8, 32>}, {transform_indices = @transform_1, window_bounds = array<i64: 2, 8>}, {pipeline_mode = #tpu.pipeline_mode<synchronous>, transform_indices = @transform_2, window_bounds = array<i64: 1, 32>}, {transform_indices = @transform_3, window_bounds = array<i64: 2, 32>}]} {
    %c0 = arith.constant 0 : index
    %c0_0 = arith.constant 0 : index
    %c0_1 = arith.constant 0 : index
    %0 = vector.load %arg1[%c0, %c0_0, %c0_1] : memref<2x8x32xf32, #tpu.memory_space<vmem>>, vector<2x8x32xf32>
    %c0_2 = arith.constant 0 : index
    %c0_3 = arith.constant 0 : index
    %1 = vector.load %arg2[%c0_2, %c0_3] : memref<2x8xf32, #tpu.memory_space<vmem>>, vector<2x8xf32>
    %c0_4 = arith.constant 0 : index
    %c0_5 = arith.constant 0 : index
    %2 = vector.load %arg3[%c0_4, %c0_5] : memref<1x32xf32, #tpu.memory_space<vmem>>, vector<1x32xf32>
    %3 = vector.shape_cast %2 : vector<1x32xf32> to vector<1x1x32xf32>
    %4 = vector.broadcast %3 : vector<1x1x32xf32> to vector<2x8x32xf32>
    %5 = arith.mulf %0, %4 : vector<2x8x32xf32>
    %cst = arith.constant dense<0.000000e+00> : vector<2x8xf32>
    %6 = vector.multi_reduction <add>, %5, %cst [2] : vector<2x8x32xf32> to vector<2x8xf32>
    %cst_6 = arith.constant 1.000000e+00 : f32
    %7 = vector.broadcast %cst_6 : f32 to vector<2x8xf32>
    %8 = arith.subf %7, %1 : vector<2x8xf32>
    %cst_7 = arith.constant -1.000000e+30 : f32
    %9 = vector.broadcast %cst_7 : f32 to vector<2x8xf32>
    %10 = arith.mulf %8, %9 : vector<2x8xf32>
    %11 = arith.addf %6, %10 : vector<2x8xf32>
    %cst_8 = arith.constant dense<0xFF800000> : vector<2xf32>
    %12 = vector.multi_reduction <maximumf>, %11, %cst_8 [1] : vector<2x8xf32> to vector<2xf32>
    %13 = vector.shape_cast %12 : vector<2xf32> to vector<2x1xf32>
    %14 = vector.broadcast %13 : vector<2x1xf32> to vector<2x8xf32>
    %15 = arith.subf %11, %14 : vector<2x8xf32>
    %16 = math.exp %15 : vector<2x8xf32>
    %cst_9 = arith.constant dense<0.000000e+00> : vector<2xf32>
    %17 = vector.multi_reduction <add>, %16, %cst_9 [1] : vector<2x8xf32> to vector<2xf32>
    %18 = vector.shape_cast %17 : vector<2xf32> to vector<2x1xf32>
    %19 = vector.shape_cast %16 : vector<2x8xf32> to vector<2x8x1xf32>
    %20 = vector.broadcast %19 : vector<2x8x1xf32> to vector<2x8x32xf32>
    %21 = arith.mulf %20, %0 : vector<2x8x32xf32>
    %cst_10 = arith.constant dense<0.000000e+00> : vector<2x32xf32>
    %22 = vector.multi_reduction <add>, %21, %cst_10 [1] : vector<2x8x32xf32> to vector<2x32xf32>
    %23 = vector.broadcast %18 : vector<2x1xf32> to vector<2x32xf32>
    %24 = arith.divf %22, %23 : vector<2x32xf32>
    %c0_11 = arith.constant 0 : index
    %c0_12 = arith.constant 0 : index
    %25 = vector.load %arg4[%c0_11, %c0_12] : memref<2x32xf32, #tpu.memory_space<vmem>>, vector<2x32xf32>
    tpu.vector_store %arg4[%c0_11, %c0_12], %24 {strides = array<i32>} : memref<2x32xf32, #tpu.memory_space<vmem>>, vector<2x32xf32>,
    return
  }
  func.func @transform_0(%arg0: i32) -> (i32, i32, i32) {
    %c0_i32 = arith.constant 0 : i32
    %c0_i32_0 = arith.constant 0 : i32
    %c0_i32_1 = arith.constant 0 : i32
    return %arg0, %c0_i32, %c0_i32_0 : i32, i32, i32
  }
  func.func @transform_1(%arg0: i32) -> (i32, i32) {
    %c0_i32 = arith.constant 0 : i32
    %c0_i32_0 = arith.constant 0 : i32
    return %arg0, %c0_i32 : i32, i32
  }
  func.func @transform_2(%arg0: i32) -> (i32, i32) {
    %c0_i32 = arith.constant 0 : i32
    %c0_i32_0 = arith.constant 0 : i32
    %c0_i32_1 = arith.constant 0 : i32
    return %c0_i32, %c0_i32_0 : i32, i32
  }
  func.func @transform_3(%arg0: i32) -> (i32, i32) {
    %c0_i32 = arith.constant 0 : i32
    %c0_i32_0 = arith.constant 0 : i32
    return %arg0, %c0_i32 : i32, i32
  }
}

</mosaic_0001>

<llo_original>
// kernel: weighted_pool.1
$region0: #{weighted_pool.1}
  #allocation0 [shape = 'u32[]', space=smem, size = 0x4, offset = 0x4, fixed_abs, tag = 'smem constant byte address 0x4 - core index']
  #allocation1 [shape = 'u32[144,128]{1,0:T(1,128)}', space=vmem, size = 0x12000, scoped, tag = 'internal scratch']
  %s0 = inlined_call_operand.hbm [shape: f32[2,8,32], index: 0, kind: input, shape index: {}]
  %s1 = inlined_call_operand.vmem [shape: f32[2,8], index: 1, kind: input, shape index: {}]
  %s2 = inlined_call_operand.vmem [shape: f32[1,32], index: 2, kind: input, shape index: {}]
  %s3 = inlined_call_operand.hbm [shape: f32[2,32], index: 3, kind: output, shape index: {}]
  %s4 = sld [smem:[#allocation0]]
  $region26: #{weighted_pool.1} parent=0
    _
  %s6 = ssub.s32 1, %s4
  %s7 = scalar_select 0, %s6, %s4
  $region1: #{weighted_pool.1} parent=0
    #allocation2 [shape = 'u8[8192]{0}', space=vmem, size = 0x2000, scoped, tag = 'input window, operand 0, single buffered']
    #allocation3 [shape = 's32[1]{0}', space=sflag, size = 0x4, scoped, tag = 'scoped memory for weighted_pool.1']
    #allocation4 [shape = 's32[1]{0}', space=sflag, size = 0x4, scoped, tag = 'scoped memory for weighted_pool.1']
    #allocation5 [shape = 'u8[1024]{0}', space=vmem, size = 0x400, scoped, tag = 'output window, operand 0, single buffered']
    %8 = vsyncpa [#allocation3], 0
    %9 = vsyncpa [#allocation4], 0
    // Predicated region
    $region2: #{weighted_pool.1} parent=1 // pred_check
      _
    $region3: #{weighted_pool.1} parent=1 // pred_check_branch
      %11 = sbr.rel (0) target = $region5
    $region4: #{weighted_pool.1} parent=1 // pred_region
      %s13 = ssub.s32 256, 256
      %14 = vsyncadd [#allocation3], %s13
      %s15 = sshll.u32 [#allocation2], 4
      %s16 = int_to_ptr.vmem [resolvable:$true] %s15
      %21 = dma.hbm_to_vmem [thread:$0]  %s0, 256, %s16, [#allocation3], 128, 128, 8
    $region5: #{weighted_pool.1} parent=1 // pred_fallthru
      _
    // Predicated region
    $region6: #{weighted_pool.1} parent=1 // pred_check
      _
    $region7: #{weighted_pool.1} parent=1 // pred_check_branch
      %23 = sbr.rel (0) target = $region9
    $region8: #{weighted_pool.1} parent=1 // pred_region
      _
    $region9: #{weighted_pool.1} parent=1 // pred_fallthru
      _
    // Predicated region
    $region10: #{weighted_pool.1} parent=1 // pred_check
      _
    $region11: #{weighted_pool.1} parent=1 // pred_check_branch
      %25 = sbr.rel (0) target = $region13
    $region12: #{weighted_pool.1} parent=1 // pred_region
      _
    $region13: #{weighted_pool.1} parent=1 // pred_fallthru
      _
    // Predicated region
    $region14: #{weighted_pool.1} parent=1 // pred_check
      _
    $region15: #{weighted_pool.1} parent=1 // pred_check_branch
      %27 = sbr.rel (0) target = $region17
    $region16: #{weighted_pool.1} parent=1 // pred_region
      %28 = dma.done [#allocation3], 256
    $region17: #{weighted_pool.1} parent=1 // pred_fallthru
      _
    %v29 = vld [vmem:[#allocation2] sm:$0xff]
    %v30 = vld [vmem:[#allocation2 + $0x8] sm:$0xff]
    %v31 = vld [vmem:[%s1] sm:$0x3]
    %v32 = vld [vmem:[%s2] sm:$0x1]
    %v34 = vlaneseq
    %v35 = vshrl.u32 %v34, 7
    %v36 = vsub.s32 0, %v35
    %v37 = vrot.slane %v32, %v36
    %v39 = vmul.f32 %v29, %v37
    %v40 = vmul.f32 %v30, %v37
    %vm41 = vcmask 261120
    %v42 = vsel %vm41, %v39, 0.0
    %43 = vadd.xlane.f32.xlu0 %v42
    %v44 = vpop.xlane.xlu0 %43
    %v45 = vsel %vm41, %v40, 0.0
    %46 = vadd.xlane.f32.xlu0 %v45
    %v47 = vpop.xlane.xlu0 %46
    %v48 = vsub.f32 1.0, %v31
    %v49 = vmul.f32 %v48, -1e+30
    %v51 = vlaneseq
    %v52 = vshrl.u32 %v51, 7
    %v53 = vsub.s32 0, %v52
    %v54 = vrot.slane %v49, %v53
    %56 = vbcast.lane.b32.xlu0 %v54, 256
    %v57 = vpop.permute.xlu0 %56
    %v58 = vlaneseq
    %v59 = vshrl.u32 %v58, 7
    %v60 = vsub.s32 1, %v59
    %v61 = vrot.slane %v49, %v60
    %63 = vbcast.lane.b32.xlu0 %v61, 256
    %v64 = vpop.permute.xlu0 %63
    %v67 = vadd.f32 %v44, %v57
    %v68 = vadd.f32 %v47, %v64
    %71 = vset.pattern.permute.xlu0 0
    %72 = vperm.xlu0 %71, %v67
    %v73 = vpop.permute.xlu0 %72
    %74 = vset.pattern.permute.xlu0 0
    %75 = vperm.xlu0 %74, %v68
    %v76 = vpop.permute.xlu0 %75
    %v77 = vlaneseq
    %v78 = vand.u32 %v77, 127
    %v79 = vlaneseq
    %v80 = vshrl.u32 %v79, 7
    %v81 = vsub.s32 %v78, %v80
    %v82 = vrot.slane %v73, %v81
    %v83 = vlaneseq
    %v84 = vshrl.u32 %v83, 7
    %v85 = vsub.s32 %v78, %v84
    %v86 = vrot.slane %v76, %v85
    %vm87 = vcmask 1041409
    %v88 = vsel %vm87, %v86, %v82
    %vm90 = vcmask 58368
    %v91 = vsel %vm90, %v88, -inf
    %92 = vmax.xlane.f32.xlu0 %v91
    %v93 = vpop.xlane.xlu0 %92
    %v95 = vlaneseq
    %v96 = vshrl.u32 %v95, 7
    %v97 = vsub.s32 0, %v96
    %v98 = vrot.slane %v93, %v97
    %v99 = vlaneseq
    %v100 = vshrl.u32 %v99, 7
    %v101 = vsub.s32 1, %v100
    %v102 = vrot.slane %v93, %v101
    %v105 = vsub.f32 %v67, %v98
    %v106 = vsub.f32 %v68, %v102
    %v107 = vmul.f32 %v105, 1.442695
    %v108 = vpow.pop %v107
    %v109 = vmul.f32 %v106, 1.442695
    %v110 = vpow.pop %v109
    %113 = vset.pattern.permute.xlu0 0
    %114 = vperm.xlu0 %113, %v108
    %v115 = vpop.permute.xlu0 %114
    %116 = vset.pattern.permute.xlu0 0
    %117 = vperm.xlu0 %116, %v110
    %v118 = vpop.permute.xlu0 %117
    %v119 = vlaneseq
    %v120 = vshrl.u32 %v119, 7
    %v121 = vsub.s32 %v78, %v120
    %v122 = vrot.slane %v115, %v121
    %v123 = vlaneseq
    %v124 = vshrl.u32 %v123, 7
    %v125 = vsub.s32 %v78, %v124
    %v126 = vrot.slane %v118, %v125
    %v127 = vsel %vm87, %v126, %v122
    %v129 = vsel %vm90, %v127, 0.0
    %130 = vadd.xlane.f32.xlu0 %v129
    %v131 = vpop.xlane.xlu0 %130
    %v134 = vmul.f32 %v115, %v29
    %v135 = vmul.f32 %v118, %v30
    %v136 = vsel %vm41, %v134, 0.0
    %v137 = vrot.slane %v136, 4
    %v138 = vadd.f32 %v136, %v137
    %v139 = vrot.slane %v138, 2
    %v140 = vadd.f32 %v138, %v139
    %v141 = vrot.slane %v140, 1
    %v142 = vadd.f32 %v140, %v141
    %v143 = vsel %vm41, %v135, 0.0
    %v144 = vrot.slane %v143, 4
    %v145 = vadd.f32 %v143, %v144
    %v146 = vrot.slane %v145, 2
    %v147 = vadd.f32 %v145, %v146
    %v148 = vrot.slane %v147, 1
    %v149 = vadd.f32 %v147, %v148
    %v151 = vrot.slane %v131, 1
    %v154 = vrcp.pop %v131
    %v155 = vmul.f32 %v142, %v154
    %v156 = vrcp.pop %v151
    %v157 = vmul.f32 %v149, %v156
    %v160 = vrot.slane %v157, 7
    %v161 = vsel %vm87, %v160, %v155
    %vm163 = vcmask 254976
    %164 = vst.msk [vmem:[#allocation5] sm:$0x3] %vm163, %v161
    // Predicated region
    $region18: #{weighted_pool.1} parent=1 // pred_check
      _
    $region19: #{weighted_pool.1} parent=1 // pred_check_branch
      %166 = sbr.rel (0) target = $region21
    $region20: #{weighted_pool.1} parent=1 // pred_region
      %s168 = ssub.s32 32, 32
      %169 = vsyncadd [#allocation4], %s168
      %s171 = sshll.u32 [#allocation5], 4
      %s172 = int_to_ptr.vmem [resolvable:$true] %s171
      %174 = dma.vmem_to_hbm [thread:$0]  %s172, 32, %s3, [#allocation4]
    $region21: #{weighted_pool.1} parent=1 // pred_fallthru
      _
    // Predicated region
    $region22: #{weighted_pool.1} parent=1 // pred_check
      _
    $region23: #{weighted_pool.1} parent=1 // pred_check_branch
      %176 = sbr.rel (0) target = $region25
    $region24: #{weighted_pool.1} parent=1 // pred_region
      %177 = dma.done [#allocation4], 32
    $region25: #{weighted_pool.1} parent=1 // pred_fallthru
      _
    %178 = vsyncpa [#allocation3], 1
    %179 = vsyncpa [#allocation4], 1

</llo_original>
